<compile_context>
chip_gen: v7x
topology: tpu7x:2x2x1
jax: 0.10.0
libtpu: 0.0.40
codegen_flags: <defaults>
</compile_context>

<pallas_src>
import functools

import jax
import jax.numpy as jnp
from jax.experimental import pallas as pl
from jax.experimental.pallas import tpu as pltpu


LANE = 128     # vreg lane width (last dim grain)
SUBLANE = 8    # vreg sublane width (second-to-last dim grain)


def _round_up(x, m):
    return ((x + m - 1) // m) * m


def _fused_mlp_kernel(*refs, n_layers, layer_out_dims):
    """Fused MLP on one batch tile.

    refs = (x_ref, w0, b0, w1, b1, ..., o_ref, h_a, h_b)
    layer_out_dims are the PADDED output widths of each layer.
    """
    x_ref = refs[0]
    wb_refs = refs[1:1 + 2 * n_layers]
    o_ref = refs[1 + 2 * n_layers]
    h_refs = refs[2 + 2 * n_layers:]          # two ping-pong VMEM scratch bufs

    cur = x_ref[...]                          # (TB, in_pad)
    for i in range(n_layers):
        w = wb_refs[2 * i][...]               # (d_in_pad, d_out_pad)
        b = wb_refs[2 * i + 1][...]           # (1, d_out_pad)
        # MXU operands in the parameter dtype (bf16-ready on v6e/v7x),
        # accumulate in f32; elementwise epilogue stays f32 (v5e-safe).
        y = jnp.dot(cur.astype(w.dtype), w,
                    preferred_element_type=jnp.float32)
        y = y + b.astype(jnp.float32)
        if i < n_layers - 1:
            y = jnp.maximum(y, 0.0)           # relu
            d = layer_out_dims[i]
            buf = h_refs[i % 2]
            buf[:, :d] = y                    # lane-aligned static slice
            cur = buf[:, :d]
        else:
            # Exact sigmoid (keeps 1e-5 tolerance vs. the reference).
            y = 1.0 / (1.0 + jnp.exp(-y))
            o_ref[...] = y.astype(o_ref.dtype)


def init_decoder_mlp_params(key, input_dim, hidden_dims, output_dim):
    """Deterministic init mirroring nn.Linear (weights stored as (in, out))."""
    dims = [input_dim] + list(hidden_dims) + [output_dim]
    params = []
    for i in range(len(dims) - 1):
        fan_in, fan_out = dims[i], dims[i + 1]
        key, kw, kb = jax.random.split(key, 3)
        bound = 1.0 / jnp.sqrt(jnp.float32(fan_in))
        w = jax.random.uniform(kw, (fan_in, fan_out), jnp.float32, -bound, bound)
        b = jax.random.uniform(kb, (fan_out,), jnp.float32, -bound, bound)
        params.append((w, b))
    return params


def prepare_decoder_mlp_params(params, param_dtype=jnp.float32):
    """One-time layout prep: zero-pad dims to 128-lane multiples, bias -> (1, out)."""
    prepared = []
    for w, b in params:
        fi, fo = w.shape
        fi_p, fo_p = _round_up(fi, LANE), _round_up(fo, LANE)
        wp = jnp.zeros((fi_p, fo_p), param_dtype).at[:fi, :fo].set(
            w.astype(param_dtype))
        bp = jnp.zeros((1, fo_p), jnp.float32).at[0, :fo].set(
            b.astype(jnp.float32))
        prepared.append((wp, bp))
    return prepared


def decoder_mlp_forward(prepared_params, x, output_dim, *, block_batch=128):
    """Fused Pallas implementation of Decoder_MLP.forward.

    prepared_params: output of prepare_decoder_mlp_params.
    x: (B, input_dim) activations.
    """
    B, d_in = x.shape
    n_layers = len(prepared_params)
    in_pad = prepared_params[0][0].shape[0]
    out_pad = prepared_params[-1][0].shape[1]
    layer_out_dims = tuple(w.shape[1] for (w, _) in prepared_params)

    # Batch tiling: tile is a sublane multiple; pad batch to a tile multiple.
    tb = min(_round_up(B, SUBLANE), block_batch)
    b_pad = _round_up(B, tb)
    grid = (b_pad // tb,)

    # Pad input (zeros in padded rows/lanes are harmless: padded weight
    # rows are zero).
    x_p = jnp.zeros((b_pad, in_pad), x.dtype).at[:B, :d_in].set(x)

    # BlockSpecs: x/out tiled over batch; weights/biases resident (block == array).
    in_specs = [pl.BlockSpec((tb, in_pad), lambda i: (i, 0))]
    flat_wb = []
    for w, b in prepared_params:
        in_specs.append(pl.BlockSpec(w.shape, lambda i: (0, 0)))
        in_specs.append(pl.BlockSpec(b.shape, lambda i: (0, 0)))
        flat_wb.extend([w, b])
    out_spec = pl.BlockSpec((tb, out_pad), lambda i: (i, 0))

    max_hidden = max(layer_out_dims[:-1]) if n_layers > 1 else out_pad
    scratch_shapes = [
        pltpu.VMEM((tb, max_hidden), jnp.float32),
        pltpu.VMEM((tb, max_hidden), jnp.float32),
    ]

    kernel = functools.partial(
        _fused_mlp_kernel, n_layers=n_layers, layer_out_dims=layer_out_dims)

    flops = 2 * b_pad * sum(w.shape[0] * w.shape[1] for w, _ in prepared_params)
    bytes_accessed = (
        x_p.dtype.itemsize * b_pad * (in_pad + out_pad)
        + sum(w.size * w.dtype.itemsize + b.size * b.dtype.itemsize
              for w, b in prepared_params))
    cost = pl.CostEstimate(flops=flops,
                           transcendentals=b_pad * out_pad,
                           bytes_accessed=bytes_accessed)

    out_p = pl.pallas_call(
        kernel,
        out_shape=jax.ShapeDtypeStruct((b_pad, out_pad), x.dtype),
        grid_spec=pltpu.PrefetchScalarGridSpec(
            num_scalar_prefetch=0,
            grid=grid,
            in_specs=in_specs,
            out_specs=out_spec,
            scratch_shapes=scratch_shapes),
        compiler_params=pltpu.CompilerParams(
            dimension_semantics=("parallel",)),
        cost_estimate=cost,
    )(x_p, *flat_wb)

    # Trim batch padding and padded output lanes (sigmoid(0)=0.5 lives there).
    return out_p[:B, :output_dim]


def decoder_mlp_reference(params, x):
    """Plain-JAX reference for sanity checking (unpadded params)."""
    n = len(params)
    for i in range(n - 1):
        w, b = params[i]
        x = jnp.maximum(x @ w + b, 0.0)
    w, b = params[-1]
    return jax.nn.sigmoid(x @ w + b)


if __name__ == "__main__":
    # Small shapes consistent with the module: latent input -> MLP -> output.
    batch = 4
    input_dim = 8
    hidden_dims = [32, 32]
    output_dim = 64

    key = jax.random.PRNGKey(0)
    key, kx = jax.random.split(key)
    x = jax.random.normal(kx, (batch, input_dim), jnp.float32)

    params = init_decoder_mlp_params(key, input_dim, hidden_dims, output_dim)
    prepared = prepare_decoder_mlp_params(params)  # one-time layout prep

    out = decoder_mlp_forward(prepared, x, output_dim)
    out = jax.block_until_ready(out)

    ref = decoder_mlp_reference(params, x)
    assert out.shape == (batch, output_dim)
    assert jnp.allclose(out, ref, atol=1e-5, rtol=1e-5), "mismatch vs reference"

    print("KERNEL_OK")
</pallas_src>

<mosaic_0001>
module attributes {stable_mosaic.version = 11 : i64} {
  func.func @_fused_mlp_kernel(%arg0: i32, %arg1: memref<8x128xf32, #tpu.memory_space<vmem>>, %arg2: memref<128x128xf32, #tpu.memory_space<vmem>>, %arg3: memref<1x128xf32, #tpu.memory_space<vmem>>, %arg4: memref<128x128xf32, #tpu.memory_space<vmem>>, %arg5: memref<1x128xf32, #tpu.memory_space<vmem>>, %arg6: memref<128x128xf32, #tpu.memory_space<vmem>>, %arg7: memref<1x128xf32, #tpu.memory_space<vmem>>, %arg8: memref<8x128xf32, #tpu.memory_space<vmem>>, %arg9: memref<8x128xf32, #tpu.memory_space<vmem>>, %arg10: memref<8x128xf32, #tpu.memory_space<vmem>>) attributes {dimension_semantics = [#tpu.dimension_semantics<parallel>], iteration_bounds = array<i64: 1>, scalar_prefetch = 0 : i64, scratch_operands = 2 : i64, tpu.core_type = #tpu.core_type<tc>, window_params = [{transform_indices = @transform_0, window_bounds = array<i64: 8, 128>}, {pipeline_mode = #tpu.pipeline_mode<synchronous>, transform_indices = @transform_1, window_bounds = array<i64: 128, 128>}, {pipeline_mode = #tpu.pipeline_mode<synchronous>, transform_indices = @transform_2, window_bounds = array<i64: 1, 128>}, {pipeline_mode = #tpu.pipeline_mode<synchronous>, transform_indices = @transform_3, window_bounds = array<i64: 128, 128>}, {pipeline_mode = #tpu.pipeline_mode<synchronous>, transform_indices = @transform_4, window_bounds = array<i64: 1, 128>}, {pipeline_mode = #tpu.pipeline_mode<synchronous>, transform_indices = @transform_5, window_bounds = array<i64: 128, 128>}, {pipeline_mode = #tpu.pipeline_mode<synchronous>, transform_indices = @transform_6, window_bounds = array<i64: 1, 128>}, {transform_indices = @transform_7, window_bounds = array<i64: 8, 128>}]} {
    %c0 = arith.constant 0 : index
    %c0_0 = arith.constant 0 : index
    %0 = vector.load %arg1[%c0, %c0_0] : memref<8x128xf32, #tpu.memory_space<vmem>>, vector<8x128xf32>
    %c0_1 = arith.constant 0 : index
    %c0_2 = arith.constant 0 : index
    %1 = vector.load %arg2[%c0_1, %c0_2] : memref<128x128xf32, #tpu.memory_space<vmem>>, vector<128x128xf32>
    %c0_3 = arith.constant 0 : index
    %c0_4 = arith.constant 0 : index
    %2 = vector.load %arg3[%c0_3, %c0_4] : memref<1x128xf32, #tpu.memory_space<vmem>>, vector<1x128xf32>
    %cst = arith.constant dense<0.000000e+00> : vector<8x128xf32>
    %3 = tpu.matmul %0, %1, %cst {dimension_numbers = #tpu.dot_dimension_numbers<[1], [0], [0], [1], [0, 0, 1, 1], [], []>} : vector<8x128xf32>, vector<128x128xf32>, vector<8x128xf32> -> vector<8x128xf32>
    %4 = vector.broadcast %2 : vector<1x128xf32> to vector<8x128xf32>
    %5 = arith.addf %3, %4 : vector<8x128xf32>
    %cst_5 = arith.constant 0.000000e+00 : f32
    %6 = vector.broadcast %cst_5 : f32 to vector<8x128xf32>
    %7 = arith.maximumf %5, %6 : vector<8x128xf32>
    %c0_6 = arith.constant 0 : index
    %c0_7 = arith.constant 0 : index
    %8 = vector.load %arg9[%c0_6, %c0_7] : memref<8x128xf32, #tpu.memory_space<vmem>>, vector<8x128xf32>
    tpu.vector_store %arg9[%c0_6, %c0_7], %7 {strides = array<i32>} : memref<8x128xf32, #tpu.memory_space<vmem>>, vector<8x128xf32>,
    %c0_8 = arith.constant 0 : index
    %c0_9 = arith.constant 0 : index
    %9 = vector.load %arg9[%c0_8, %c0_9] : memref<8x128xf32, #tpu.memory_space<vmem>>, vector<8x128xf32>
    %c0_10 = arith.constant 0 : index
    %c0_11 = arith.constant 0 : index
    %10 = vector.load %arg4[%c0_10, %c0_11] : memref<128x128xf32, #tpu.memory_space<vmem>>, vector<128x128xf32>
    %c0_12 = arith.constant 0 : index
    %c0_13 = arith.constant 0 : index
    %11 = vector.load %arg5[%c0_12, %c0_13] : memref<1x128xf32, #tpu.memory_space<vmem>>, vector<1x128xf32>
    %cst_14 = arith.constant dense<0.000000e+00> : vector<8x128xf32>
    %12 = tpu.matmul %9, %10, %cst_14 {dimension_numbers = #tpu.dot_dimension_numbers<[1], [0], [0], [1], [0, 0, 1, 1], [], []>} : vector<8x128xf32>, vector<128x128xf32>, vector<8x128xf32> -> vector<8x128xf32>
    %13 = vector.broadcast %11 : vector<1x128xf32> to vector<8x128xf32>
    %14 = arith.addf %12, %13 : vector<8x128xf32>
    %cst_15 = arith.constant 0.000000e+00 : f32
    %15 = vector.broadcast %cst_15 : f32 to vector<8x128xf32>
    %16 = arith.maximumf %14, %15 : vector<8x128xf32>
    %c0_16 = arith.constant 0 : index
    %c0_17 = arith.constant 0 : index
    %17 = vector.load %arg10[%c0_16, %c0_17] : memref<8x128xf32, #tpu.memory_space<vmem>>, vector<8x128xf32>
    tpu.vector_store %arg10[%c0_16, %c0_17], %16 {strides = array<i32>} : memref<8x128xf32, #tpu.memory_space<vmem>>, vector<8x128xf32>,
    %c0_18 = arith.constant 0 : index
    %c0_19 = arith.constant 0 : index
    %18 = vector.load %arg10[%c0_18, %c0_19] : memref<8x128xf32, #tpu.memory_space<vmem>>, vector<8x128xf32>
    %c0_20 = arith.constant 0 : index
    %c0_21 = arith.constant 0 : index
    %19 = vector.load %arg6[%c0_20, %c0_21] : memref<128x128xf32, #tpu.memory_space<vmem>>, vector<128x128xf32>
    %c0_22 = arith.constant 0 : index
    %c0_23 = arith.constant 0 : index
    %20 = vector.load %arg7[%c0_22, %c0_23] : memref<1x128xf32, #tpu.memory_space<vmem>>, vector<1x128xf32>
    %cst_24 = arith.constant dense<0.000000e+00> : vector<8x128xf32>
    %21 = tpu.matmul %18, %19, %cst_24 {dimension_numbers = #tpu.dot_dimension_numbers<[1], [0], [0], [1], [0, 0, 1, 1], [], []>} : vector<8x128xf32>, vector<128x128xf32>, vector<8x128xf32> -> vector<8x128xf32>
    %22 = vector.broadcast %20 : vector<1x128xf32> to vector<8x128xf32>
    %23 = arith.addf %21, %22 : vector<8x128xf32>
    %cst_25 = arith.constant 0.000000e+00 : f32
    %24 = vector.broadcast %cst_25 : f32 to vector<8x128xf32>
    %25 = arith.subf %24, %23 : vector<8x128xf32>
    %26 = math.exp %25 : vector<8x128xf32>
    %cst_26 = arith.constant 1.000000e+00 : f32
    %27 = vector.broadcast %cst_26 : f32 to vector<8x128xf32>
    %28 = arith.addf %27, %26 : vector<8x128xf32>
    %cst_27 = arith.constant 1.000000e+00 : f32
    %29 = vector.broadcast %cst_27 : f32 to vector<8x128xf32>
    %30 = arith.divf %29, %28 : vector<8x128xf32>
    %c0_28 = arith.constant 0 : index
    %c0_29 = arith.constant 0 : index
    %31 = vector.load %arg8[%c0_28, %c0_29] : memref<8x128xf32, #tpu.memory_space<vmem>>, vector<8x128xf32>
    tpu.vector_store %arg8[%c0_28, %c0_29], %30 {strides = array<i32>} : memref<8x128xf32, #tpu.memory_space<vmem>>, vector<8x128xf32>,
    return
  }
  func.func @transform_0(%arg0: i32) -> (i32, i32) {
    %c0_i32 = arith.constant 0 : i32
    %c0_i32_0 = arith.constant 0 : i32
    return %arg0, %c0_i32 : i32, i32
  }
  func.func @transform_1(%arg0: i32) -> (i32, i32) {
    %c0_i32 = arith.constant 0 : i32
    %c0_i32_0 = arith.constant 0 : i32
    %c0_i32_1 = arith.constant 0 : i32
    return %c0_i32, %c0_i32_0 : i32, i32
  }
  func.func @transform_2(%arg0: i32) -> (i32, i32) {
    %c0_i32 = arith.constant 0 : i32
    %c0_i32_0 = arith.constant 0 : i32
    %c0_i32_1 = arith.constant 0 : i32
    return %c0_i32, %c0_i32_0 : i32, i32
  }
  func.func @transform_3(%arg0: i32) -> (i32, i32) {
    %c0_i32 = arith.constant 0 : i32
    %c0_i32_0 = arith.constant 0 : i32
    %c0_i32_1 = arith.constant 0 : i32
    return %c0_i32, %c0_i32_0 : i32, i32
  }
  func.func @transform_4(%arg0: i32) -> (i32, i32) {
    %c0_i32 = arith.constant 0 : i32
    %c0_i32_0 = arith.constant 0 : i32
    %c0_i32_1 = arith.constant 0 : i32
    return %c0_i32, %c0_i32_0 : i32, i32
  }
  func.func @transform_5(%arg0: i32) -> (i32, i32) {
    %c0_i32 = arith.constant 0 : i32
    %c0_i32_0 = arith.constant 0 : i32
    %c0_i32_1 = arith.constant 0 : i32
    return %c0_i32, %c0_i32_0 : i32, i32
  }
  func.func @transform_6(%arg0: i32) -> (i32, i32) {
    %c0_i32 = arith.constant 0 : i32
    %c0_i32_0 = arith.constant 0 : i32
    %c0_i32_1 = arith.constant 0 : i32
    return %c0_i32, %c0_i32_0 : i32, i32
  }
  func.func @transform_7(%arg0: i32) -> (i32, i32) {
    %c0_i32 = arith.constant 0 : i32
    %c0_i32_0 = arith.constant 0 : i32
    return %arg0, %c0_i32 : i32, i32
  }
}

</mosaic_0001>

<llo_original>
// kernel: tpu_custom_call.1
$region0: #{tpu_custom_call.1}
  #allocation0 [shape = 'u32[]', space=smem, size = 0x4, offset = 0x4, fixed_abs, tag = 'smem constant byte address 0x4 - core index']
  #allocation1 [shape = 'u32[144,128]{1,0:T(1,128)}', space=vmem, size = 0x12000, scoped, tag = 'internal scratch']
  #allocation2 [shape = 'f32[8,128]{1,0:T(8,128)}', space=vmem, size = 0x1000, scoped, tag = 'scratch operand']
  #allocation3 [shape = 'f32[8,128]{1,0:T(8,128)}', space=vmem, size = 0x1000, scoped, tag = 'scratch operand']
  %s0 = inlined_call_operand.hbm [shape: f32[8,128], index: 0, kind: input, shape index: {}]
  %s1 = inlined_call_operand.hbm [shape: f32[128,128], index: 1, kind: input, shape index: {}]
  %s2 = inlined_call_operand.vmem [shape: f32[1,128], index: 2, kind: input, shape index: {}]
  %s3 = inlined_call_operand.hbm [shape: f32[128,128], index: 3, kind: input, shape index: {}]
  %s4 = inlined_call_operand.vmem [shape: f32[1,128], index: 4, kind: input, shape index: {}]
  %s5 = inlined_call_operand.hbm [shape: f32[128,128], index: 5, kind: input, shape index: {}]
  %s6 = inlined_call_operand.vmem [shape: f32[1,128], index: 6, kind: input, shape index: {}]
  %s7 = inlined_call_operand.hbm [shape: f32[8,128], index: 7, kind: output, shape index: {}]
  %s8 = sld [smem:[#allocation0]]
  $region54: #{tpu_custom_call.1} parent=0
    _
  %s10 = ssub.s32 1, %s8
  %s11 = scalar_select 0, %s10, %s8
  $region1: #{tpu_custom_call.1} parent=0
    #allocation4 [shape = 'u8[4096]{0}', space=vmem, size = 0x1000, scoped, tag = 'input window, operand 0, single buffered']
    #allocation5 [shape = 's32[1]{0}', space=sflag, size = 0x4, scoped, tag = 'scoped memory for tpu_custom_call.1']
    #allocation6 [shape = 's32[1]{0}', space=sflag, size = 0x4, scoped, tag = 'scoped memory for tpu_custom_call.1']
    #allocation7 [shape = 'u8[65536]{0}', space=vmem, size = 0x10000, scoped, tag = 'input window, operand 1, single buffered']
    #allocation8 [shape = 's32[1]{0}', space=sflag, size = 0x4, scoped, tag = 'scoped memory for tpu_custom_call.1']
    #allocation9 [shape = 'u8[65536]{0}', space=vmem, size = 0x10000, scoped, tag = 'input window, operand 3, single buffered']
    #allocation10 [shape = 'u8[65536]{0}', space=vmem, size = 0x10000, scoped, tag = 'input window, operand 5, single buffered']
    #allocation11 [shape = 's32[1]{0}', space=sflag, size = 0x4, scoped, tag = 'scoped memory for tpu_custom_call.1']
    #allocation12 [shape = 'u8[4096]{0}', space=vmem, size = 0x1000, scoped, tag = 'output window, operand 0, single buffered']
    %12 = vsyncpa [#allocation5], 0
    %13 = vsyncpa [#allocation8], 0
    %14 = vsyncpa [#allocation11], 0
    %15 = vsyncpa [#allocation6], 0
    // Predicated region
    $region2: #{tpu_custom_call.1} parent=1 // pred_check
      _
    $region3: #{tpu_custom_call.1} parent=1 // pred_check_branch
      %17 = sbr.rel (0) target = $region5
    $region4: #{tpu_custom_call.1} parent=1 // pred_region
      %s19 = ssub.s32 128, 128
      %20 = vsyncadd [#allocation5], %s19
      %s22 = sshll.u32 [#allocation4], 4
      %s23 = int_to_ptr.vmem [resolvable:$true] %s22
      %25 = dma.hbm_to_vmem [thread:$0]  %s0, 128, %s23, [#allocation5]
    $region5: #{tpu_custom_call.1} parent=1 // pred_fallthru
      _
    // Predicated region
    $region6: #{tpu_custom_call.1} parent=1 // pred_check
      _
    $region7: #{tpu_custom_call.1} parent=1 // pred_check_branch
      %27 = sbr.rel (0) target = $region9
    $region8: #{tpu_custom_call.1} parent=1 // pred_region
      %s29 = ssub.s32 2048, 2048
      %30 = vsyncadd [#allocation8], %s29
      %s31 = sshll.u32 [#allocation7], 4
      %s32 = int_to_ptr.vmem [resolvable:$true] %s31
      %37 = dma.hbm_to_vmem [thread:$0]  %s1, 2048, %s32, [#allocation8], 128, 128, 8
    $region9: #{tpu_custom_call.1} parent=1 // pred_fallthru
      _
    // Predicated region
    $region10: #{tpu_custom_call.1} parent=1 // pred_check
      _
    $region11: #{tpu_custom_call.1} parent=1 // pred_check_branch
      %39 = sbr.rel (0) target = $region13
    $region12: #{tpu_custom_call.1} parent=1 // pred_region
      _
    $region13: #{tpu_custom_call.1} parent=1 // pred_fallthru
      _
    // Predicated region
    $region14: #{tpu_custom_call.1} parent=1 // pred_check
      _
    $region15: #{tpu_custom_call.1} parent=1 // pred_check_branch
      %41 = sbr.rel (0) target = $region17
    $region16: #{tpu_custom_call.1} parent=1 // pred_region
      %s43 = ssub.s32 2048, 2048
      %44 = vsyncadd [#allocation8], %s43
      %s45 = sshll.u32 [#allocation9], 4
      %s46 = int_to_ptr.vmem [resolvable:$true] %s45
      %51 = dma.hbm_to_vmem [thread:$0]  %s3, 2048, %s46, [#allocation8], 128, 128, 8
    $region17: #{tpu_custom_call.1} parent=1 // pred_fallthru
      _
    // Predicated region
    $region18: #{tpu_custom_call.1} parent=1 // pred_check
      _
    $region19: #{tpu_custom_call.1} parent=1 // pred_check_branch
      %53 = sbr.rel (0) target = $region21
    $region20: #{tpu_custom_call.1} parent=1 // pred_region
      _
    $region21: #{tpu_custom_call.1} parent=1 // pred_fallthru
      _
    // Predicated region
    $region22: #{tpu_custom_call.1} parent=1 // pred_check
      _
    $region23: #{tpu_custom_call.1} parent=1 // pred_check_branch
      %55 = sbr.rel (0) target = $region25
    $region24: #{tpu_custom_call.1} parent=1 // pred_region
      %s57 = ssub.s32 2048, 2048
      %58 = vsyncadd [#allocation11], %s57
      %s59 = sshll.u32 [#allocation10], 4
      %s60 = int_to_ptr.vmem [resolvable:$true] %s59
      %65 = dma.hbm_to_vmem [thread:$0]  %s5, 2048, %s60, [#allocation11], 128, 128, 8
    $region25: #{tpu_custom_call.1} parent=1 // pred_fallthru
      _
    // Predicated region
    $region26: #{tpu_custom_call.1} parent=1 // pred_check
      _
    $region27: #{tpu_custom_call.1} parent=1 // pred_check_branch
      %67 = sbr.rel (0) target = $region29
    $region28: #{tpu_custom_call.1} parent=1 // pred_region
      _
    $region29: #{tpu_custom_call.1} parent=1 // pred_fallthru
      _
    // Predicated region
    $region30: #{tpu_custom_call.1} parent=1 // pred_check
      _
    $region31: #{tpu_custom_call.1} parent=1 // pred_check_branch
      %69 = sbr.rel (0) target = $region33
    $region32: #{tpu_custom_call.1} parent=1 // pred_region
      %70 = dma.done [#allocation5], 128
    $region33: #{tpu_custom_call.1} parent=1 // pred_fallthru
      _
    // Predicated region
    $region34: #{tpu_custom_call.1} parent=1 // pred_check
      _
    $region35: #{tpu_custom_call.1} parent=1 // pred_check_branch
      %72 = sbr.rel (0) target = $region37
    $region36: #{tpu_custom_call.1} parent=1 // pred_region
      %73 = dma.done [#allocation8], 2048
    $region37: #{tpu_custom_call.1} parent=1 // pred_fallthru
      _
    // Predicated region
    $region38: #{tpu_custom_call.1} parent=1 // pred_check
      _
    $region39: #{tpu_custom_call.1} parent=1 // pred_check_branch
      %75 = sbr.rel (0) target = $region41
    $region40: #{tpu_custom_call.1} parent=1 // pred_region
      %76 = dma.done [#allocation8], 2048
    $region41: #{tpu_custom_call.1} parent=1 // pred_fallthru
      _
    // Predicated region
    $region42: #{tpu_custom_call.1} parent=1 // pred_check
      _
    $region43: #{tpu_custom_call.1} parent=1 // pred_check_branch
      %78 = sbr.rel (0) target = $region45
    $region44: #{tpu_custom_call.1} parent=1 // pred_region
      %79 = dma.done [#allocation11], 2048
    $region45: #{tpu_custom_call.1} parent=1 // pred_fallthru
      _
    %v80 = vld [vmem:[#allocation4] sm:$0xff]
    %v81 = vld [vmem:[#allocation7] sm:$0xff]
    %v82 = vld [vmem:[#allocation7 + $0x8] sm:$0xff]
    %v83 = vld [vmem:[#allocation7 + $0x10] sm:$0xff]
    %v84 = vld [vmem:[#allocation7 + $0x18] sm:$0xff]
    %v85 = vld [vmem:[#allocation7 + $0x20] sm:$0xff]
    %v86 = vld [vmem:[#allocation7 + $0x28] sm:$0xff]
    %v87 = vld [vmem:[#allocation7 + $0x30] sm:$0xff]
    %v88 = vld [vmem:[#allocation7 + $0x38] sm:$0xff]
    %v89 = vld [vmem:[#allocation7 + $0x40] sm:$0xff]
    %v90 = vld [vmem:[#allocation7 + $0x48] sm:$0xff]
    %v91 = vld [vmem:[#allocation7 + $0x50] sm:$0xff]
    %v92 = vld [vmem:[#allocation7 + $0x58] sm:$0xff]
    %v93 = vld [vmem:[#allocation7 + $0x60] sm:$0xff]
    %v94 = vld [vmem:[#allocation7 + $0x68] sm:$0xff]
    %v95 = vld [vmem:[#allocation7 + $0x70] sm:$0xff]
    %v96 = vld [vmem:[#allocation7 + $0x78] sm:$0xff]
    %v97 = vld [vmem:[%s2] sm:$0x1]
    %v99 = vlaneseq
    %v100 = vshrl.u32 %v99, 7
    %v101 = vsub.s32 0, %v100
    %v102 = vrot.slane %v97, %v101
    %104 = vmatprep.subr.mxu0 0.0
    %105 = vmatpush1.msra.mxu0 %v81
    %106 = vmatprep.subr.mxu0 0.0
    %107 = vmatpush1.msra.mxu0 %v82
    %108 = vmatprep.subr.mxu0 0.0
    %109 = vmatpush1.msra.mxu0 %v83
    %110 = vmatprep.subr.mxu0 0.0
    %111 = vmatpush1.msra.mxu0 %v84
    %112 = vmatprep.subr.mxu0 0.0
    %113 = vmatpush1.msra.mxu0 %v85
    %114 = vmatprep.subr.mxu0 0.0
    %115 = vmatpush1.msra.mxu0 %v86
    %116 = vmatprep.subr.mxu0 0.0
    %117 = vmatpush1.msra.mxu0 %v87
    %118 = vmatprep.subr.mxu0 0.0
    %119 = vmatpush1.msra.mxu0 %v88
    %120 = vmatprep.subr.mxu0 0.0
    %121 = vmatpush1.msra.mxu0 %v89
    %122 = vmatprep.subr.mxu0 0.0
    %123 = vmatpush1.msra.mxu0 %v90
    %124 = vmatprep.subr.mxu0 0.0
    %125 = vmatpush1.msra.mxu0 %v91
    %126 = vmatprep.subr.mxu0 0.0
    %127 = vmatpush1.msra.mxu0 %v92
    %128 = vmatprep.subr.mxu0 0.0
    %129 = vmatpush1.msra.mxu0 %v93
    %130 = vmatprep.subr.mxu0 0.0
    %131 = vmatpush1.msra.mxu0 %v94
    %132 = vmatprep.subr.mxu0 0.0
    %133 = vmatpush1.msra.mxu0 %v95
    %134 = vmatprep.subr.mxu0 0.0
    %135 = vmatpush1.msra.mxu0 %v96
    %136 = vmatprep.subr.mxu0 0.0
    %137 = vmatpush1.msra.mxu0 0.0
    %138 = vmatprep.subr.mxu0 0.0
    %139 = vmatpush1.msra.mxu0 0.0
    %140 = vmatprep.subr.mxu0 0.0
    %141 = vmatpush1.msra.mxu0 0.0
    %142 = vmatprep.subr.mxu0 0.0
    %143 = vmatpush1.msra.mxu0 0.0
    %144 = vmatprep.subr.mxu0 0.0
    %145 = vmatpush1.msra.mxu0 0.0
    %146 = vmatprep.subr.mxu0 0.0
    %147 = vmatpush1.msra.mxu0 0.0
    %148 = vmatprep.subr.mxu0 0.0
    %149 = vmatpush1.msra.mxu0 0.0
    %150 = vmatprep.subr.mxu0 0.0
    %151 = vmatpush1.msra.mxu0 0.0
    %152 = vmatprep.subr.mxu0 0.0
    %153 = vmatpush1.msra.mxu0 0.0
    %154 = vmatprep.subr.mxu0 0.0
    %155 = vmatpush1.msra.mxu0 0.0
    %156 = vmatprep.subr.mxu0 0.0
    %157 = vmatpush1.msra.mxu0 0.0
    %158 = vmatprep.subr.mxu0 0.0
    %159 = vmatpush1.msra.mxu0 0.0
    %160 = vmatprep.subr.mxu0 0.0
    %161 = vmatpush1.msra.mxu0 0.0
    %162 = vmatprep.subr.mxu0 0.0
    %163 = vmatpush1.msra.mxu0 0.0
    %164 = vmatprep.subr.mxu0 0.0
    %165 = vmatpush1.msra.mxu0 0.0
    %166 = vmatprep.subr.mxu0 0.0
    %167 = vmatpush1.msra.mxu0 0.0
    %168 = vmatprep.mubr.f32.mxu0 0.0
    %169 = vmatmul.mubr.f32.gmra.mrb[0].mxu0 %v80
    %v170 = vpop.f32.mrb[0].mxu0
    %v171 = vadd.f32 %v102, %v170
    %v172 = vpop.f32.mrb[0].mxu0
    %173 = vdwg.mxu0
    %v174 = vmax.f32 %v171, 0.0
    %175 = vst [vmem:[#allocation2] sm:$0xff] %v174
    %v176 = vld [vmem:[#allocation2] sm:$0xff]
    %v177 = vld [vmem:[#allocation9] sm:$0xff]
    %v178 = vld [vmem:[#allocation9 + $0x8] sm:$0xff]
    %v179 = vld [vmem:[#allocation9 + $0x10] sm:$0xff]
    %v180 = vld [vmem:[#allocation9 + $0x18] sm:$0xff]
    %v181 = vld [vmem:[#allocation9 + $0x20] sm:$0xff]
    %v182 = vld [vmem:[#allocation9 + $0x28] sm:$0xff]
    %v183 = vld [vmem:[#allocation9 + $0x30] sm:$0xff]
    %v184 = vld [vmem:[#allocation9 + $0x38] sm:$0xff]
    %v185 = vld [vmem:[#allocation9 + $0x40] sm:$0xff]
    %v186 = vld [vmem:[#allocation9 + $0x48] sm:$0xff]
    %v187 = vld [vmem:[#allocation9 + $0x50] sm:$0xff]
    %v188 = vld [vmem:[#allocation9 + $0x58] sm:$0xff]
    %v189 = vld [vmem:[#allocation9 + $0x60] sm:$0xff]
    %v190 = vld [vmem:[#allocation9 + $0x68] sm:$0xff]
    %v191 = vld [vmem:[#allocation9 + $0x70] sm:$0xff]
    %v192 = vld [vmem:[#allocation9 + $0x78] sm:$0xff]
    %v193 = vld [vmem:[%s4] sm:$0x1]
    %v195 = vlaneseq
    %v196 = vshrl.u32 %v195, 7
    %v197 = vsub.s32 0, %v196
    %v198 = vrot.slane %v193, %v197
    %200 = vmatprep.subr.mxu0 0.0
    %201 = vmatpush1.msra.mxu0 %v177
    %202 = vmatprep.subr.mxu0 0.0
    %203 = vmatpush1.msra.mxu0 %v178
    %204 = vmatprep.subr.mxu0 0.0
    %205 = vmatpush1.msra.mxu0 %v179
    %206 = vmatprep.subr.mxu0 0.0
    %207 = vmatpush1.msra.mxu0 %v180
    %208 = vmatprep.subr.mxu0 0.0
    %209 = vmatpush1.msra.mxu0 %v181
    %210 = vmatprep.subr.mxu0 0.0
    %211 = vmatpush1.msra.mxu0 %v182
    %212 = vmatprep.subr.mxu0 0.0
    %213 = vmatpush1.msra.mxu0 %v183
    %214 = vmatprep.subr.mxu0 0.0
    %215 = vmatpush1.msra.mxu0 %v184
    %216 = vmatprep.subr.mxu0 0.0
    %217 = vmatpush1.msra.mxu0 %v185
    %218 = vmatprep.subr.mxu0 0.0
    %219 = vmatpush1.msra.mxu0 %v186
    %220 = vmatprep.subr.mxu0 0.0
    %221 = vmatpush1.msra.mxu0 %v187
    %222 = vmatprep.subr.mxu0 0.0
    %223 = vmatpush1.msra.mxu0 %v188
    %224 = vmatprep.subr.mxu0 0.0
    %225 = vmatpush1.msra.mxu0 %v189
    %226 = vmatprep.subr.mxu0 0.0
    %227 = vmatpush1.msra.mxu0 %v190
    %228 = vmatprep.subr.mxu0 0.0
    %229 = vmatpush1.msra.mxu0 %v191
    %230 = vmatprep.subr.mxu0 0.0
    %231 = vmatpush1.msra.mxu0 %v192
    %232 = vmatprep.subr.mxu0 0.0
    %233 = vmatpush1.msra.mxu0 0.0
    %234 = vmatprep.subr.mxu0 0.0
    %235 = vmatpush1.msra.mxu0 0.0
    %236 = vmatprep.subr.mxu0 0.0
    %237 = vmatpush1.msra.mxu0 0.0
    %238 = vmatprep.subr.mxu0 0.0
    %239 = vmatpush1.msra.mxu0 0.0
    %240 = vmatprep.subr.mxu0 0.0
    %241 = vmatpush1.msra.mxu0 0.0
    %242 = vmatprep.subr.mxu0 0.0
    %243 = vmatpush1.msra.mxu0 0.0
    %244 = vmatprep.subr.mxu0 0.0
    %245 = vmatpush1.msra.mxu0 0.0
    %246 = vmatprep.subr.mxu0 0.0
    %247 = vmatpush1.msra.mxu0 0.0
    %248 = vmatprep.subr.mxu0 0.0
    %249 = vmatpush1.msra.mxu0 0.0
    %250 = vmatprep.subr.mxu0 0.0
    %251 = vmatpush1.msra.mxu0 0.0
    %252 = vmatprep.subr.mxu0 0.0
    %253 = vmatpush1.msra.mxu0 0.0
    %254 = vmatprep.subr.mxu0 0.0
    %255 = vmatpush1.msra.mxu0 0.0
    %256 = vmatprep.subr.mxu0 0.0
    %257 = vmatpush1.msra.mxu0 0.0
    %258 = vmatprep.subr.mxu0 0.0
    %259 = vmatpush1.msra.mxu0 0.0
    %260 = vmatprep.subr.mxu0 0.0
    %261 = vmatpush1.msra.mxu0 0.0
    %262 = vmatprep.subr.mxu0 0.0
    %263 = vmatpush1.msra.mxu0 0.0
    %264 = vmatprep.mubr.f32.mxu0 0.0
    %265 = vmatmul.mubr.f32.gmra.mrb[0].mxu0 %v176
    %v266 = vpop.f32.mrb[0].mxu0
    %v267 = vadd.f32 %v198, %v266
    %v268 = vpop.f32.mrb[0].mxu0
    %269 = vdwg.mxu0
    %v270 = vmax.f32 %v267, 0.0
    %271 = vst [vmem:[#allocation3] sm:$0xff] %v270
    %v272 = vld [vmem:[#allocation3] sm:$0xff]
    %v273 = vld [vmem:[#allocation10] sm:$0xff]
    %v274 = vld [vmem:[#allocation10 + $0x8] sm:$0xff]
    %v275 = vld [vmem:[#allocation10 + $0x10] sm:$0xff]
    %v276 = vld [vmem:[#allocation10 + $0x18] sm:$0xff]
    %v277 = vld [vmem:[#allocation10 + $0x20] sm:$0xff]
    %v278 = vld [vmem:[#allocation10 + $0x28] sm:$0xff]
    %v279 = vld [vmem:[#allocation10 + $0x30] sm:$0xff]
    %v280 = vld [vmem:[#allocation10 + $0x38] sm:$0xff]
    %v281 = vld [vmem:[#allocation10 + $0x40] sm:$0xff]
    %v282 = vld [vmem:[#allocation10 + $0x48] sm:$0xff]
    %v283 = vld [vmem:[#allocation10 + $0x50] sm:$0xff]
    %v284 = vld [vmem:[#allocation10 + $0x58] sm:$0xff]
    %v285 = vld [vmem:[#allocation10 + $0x60] sm:$0xff]
    %v286 = vld [vmem:[#allocation10 + $0x68] sm:$0xff]
    %v287 = vld [vmem:[#allocation10 + $0x70] sm:$0xff]
    %v288 = vld [vmem:[#allocation10 + $0x78] sm:$0xff]
    %v289 = vld [vmem:[%s6] sm:$0x1]
    %v291 = vlaneseq
    %v292 = vshrl.u32 %v291, 7
    %v293 = vsub.s32 0, %v292
    %v294 = vrot.slane %v289, %v293
    %296 = vmatprep.subr.mxu0 0.0
    %297 = vmatpush1.msra.mxu0 %v273
    %298 = vmatprep.subr.mxu0 0.0
    %299 = vmatpush1.msra.mxu0 %v274
    %300 = vmatprep.subr.mxu0 0.0
    %301 = vmatpush1.msra.mxu0 %v275
    %302 = vmatprep.subr.mxu0 0.0
    %303 = vmatpush1.msra.mxu0 %v276
    %304 = vmatprep.subr.mxu0 0.0
    %305 = vmatpush1.msra.mxu0 %v277
    %306 = vmatprep.subr.mxu0 0.0
    %307 = vmatpush1.msra.mxu0 %v278
    %308 = vmatprep.subr.mxu0 0.0
    %309 = vmatpush1.msra.mxu0 %v279
    %310 = vmatprep.subr.mxu0 0.0
    %311 = vmatpush1.msra.mxu0 %v280
    %312 = vmatprep.subr.mxu0 0.0
    %313 = vmatpush1.msra.mxu0 %v281
    %314 = vmatprep.subr.mxu0 0.0
    %315 = vmatpush1.msra.mxu0 %v282
    %316 = vmatprep.subr.mxu0 0.0
    %317 = vmatpush1.msra.mxu0 %v283
    %318 = vmatprep.subr.mxu0 0.0
    %319 = vmatpush1.msra.mxu0 %v284
    %320 = vmatprep.subr.mxu0 0.0
    %321 = vmatpush1.msra.mxu0 %v285
    %322 = vmatprep.subr.mxu0 0.0
    %323 = vmatpush1.msra.mxu0 %v286
    %324 = vmatprep.subr.mxu0 0.0
    %325 = vmatpush1.msra.mxu0 %v287
    %326 = vmatprep.subr.mxu0 0.0
    %327 = vmatpush1.msra.mxu0 %v288
    %328 = vmatprep.subr.mxu0 0.0
    %329 = vmatpush1.msra.mxu0 0.0
    %330 = vmatprep.subr.mxu0 0.0
    %331 = vmatpush1.msra.mxu0 0.0
    %332 = vmatprep.subr.mxu0 0.0
    %333 = vmatpush1.msra.mxu0 0.0
    %334 = vmatprep.subr.mxu0 0.0
    %335 = vmatpush1.msra.mxu0 0.0
    %336 = vmatprep.subr.mxu0 0.0
    %337 = vmatpush1.msra.mxu0 0.0
    %338 = vmatprep.subr.mxu0 0.0
    %339 = vmatpush1.msra.mxu0 0.0
    %340 = vmatprep.subr.mxu0 0.0
    %341 = vmatpush1.msra.mxu0 0.0
    %342 = vmatprep.subr.mxu0 0.0
    %343 = vmatpush1.msra.mxu0 0.0
    %344 = vmatprep.subr.mxu0 0.0
    %345 = vmatpush1.msra.mxu0 0.0
    %346 = vmatprep.subr.mxu0 0.0
    %347 = vmatpush1.msra.mxu0 0.0
    %348 = vmatprep.subr.mxu0 0.0
    %349 = vmatpush1.msra.mxu0 0.0
    %350 = vmatprep.subr.mxu0 0.0
    %351 = vmatpush1.msra.mxu0 0.0
    %352 = vmatprep.subr.mxu0 0.0
    %353 = vmatpush1.msra.mxu0 0.0
    %354 = vmatprep.subr.mxu0 0.0
    %355 = vmatpush1.msra.mxu0 0.0
    %356 = vmatprep.subr.mxu0 0.0
    %357 = vmatpush1.msra.mxu0 0.0
    %358 = vmatprep.subr.mxu0 0.0
    %359 = vmatpush1.msra.mxu0 0.0
    %360 = vmatprep.mubr.f32.mxu0 0.0
    %361 = vmatmul.mubr.f32.gmra.mrb[0].mxu0 %v272
    %v362 = vpop.f32.mrb[0].mxu0
    %v363 = vadd.f32 %v294, %v362
    %v364 = vpop.f32.mrb[0].mxu0
    %365 = vdwg.mxu0
    %v366 = vsub.f32 0.0, %v363
    %v367 = vmul.f32 %v366, 1.442695
    %v368 = vpow.pop %v367
    %v369 = vadd.f32 %v368, 1.0
    %v370 = vrcp.pop %v369
    %v371 = vmul.f32 1.0, %v370
    %372 = vst [vmem:[#allocation12] sm:$0xff] %v371
    // Predicated region
    $region46: #{tpu_custom_call.1} parent=1 // pred_check
      _
    $region47: #{tpu_custom_call.1} parent=1 // pred_check_branch
      %374 = sbr.rel (0) target = $region49
    $region48: #{tpu_custom_call.1} parent=1 // pred_region
      %s376 = ssub.s32 128, 128
      %377 = vsyncadd [#allocation6], %s376
      %s379 = sshll.u32 [#allocation12], 4
      %s380 = int_to_ptr.vmem [resolvable:$true] %s379
      %382 = dma.vmem_to_hbm [thread:$0]  %s380, 128, %s7, [#allocation6]
    $region49: #{tpu_custom_call.1} parent=1 // pred_fallthru
      _
    // Predicated region
    $region50: #{tpu_custom_call.1} parent=1 // pred_check
      _
    $region51: #{tpu_custom_call.1} parent=1 // pred_check_branch
      %384 = sbr.rel (0) target = $region53
    $region52: #{tpu_custom_call.1} parent=1 // pred_region
      %385 = dma.done [#allocation6], 128
    $region53: #{tpu_custom_call.1} parent=1 // pred_fallthru
      _
    %386 = vsyncpa [#allocation5], 1
    %387 = vsyncpa [#allocation8], 1
    %388 = vsyncpa [#allocation11], 1
    %389 = vsyncpa [#allocation6], 1

</llo_original>
